<compile_context>
chip_gen: v5e
topology: v5e:2x2
jax: 0.10.0
libtpu: 0.0.40
codegen_flags: <defaults>
</compile_context>

<pallas_src>
import jax
import jax.numpy as jnp
from jax.experimental import pallas as pl
from jax.experimental.pallas import tpu as pltpu


def gcn_kernel(adj_ref, x_ref, w_ref, o_ref):
    x = x_ref[...]                                   # (n, d) f32
    n, d = x.shape

    # Fused graph aggregation: one (2n, n) @ (n, d) MXU pass.
    agg = jnp.dot(adj_ref[...], x, preferred_element_type=jnp.float32)   # (2n, d)
    parent_emb = agg[:n]                             # free static sublane slice
    child_emb = agg[n:]

    # Fused projection + bias: single (n, 4d) @ (4d, h_pad) MXU pass.
    # The trailing all-ones block times the bias row block of w_ref is "+ bias".
    lhs = jnp.concatenate(
        [x, parent_emb, child_emb, jnp.ones((n, d), x.dtype)], axis=-1)  # (n, 4d)
    res = jnp.dot(lhs, w_ref[...], preferred_element_type=jnp.float32)  # (n, h_pad)

    o_ref[...] = jnp.maximum(res, 0.0).astype(o_ref.dtype)


def gcn_forward(adj_parent, adj_child, label_matrix, w_self, w_parent, w_child, bias):
    """label_matrix: (N, D) like the PyTorch module, or (B, N, D) batched."""
    single = label_matrix.ndim == 2
    x = label_matrix[None] if single else label_matrix
    b, n, d = x.shape
    h = w_self.shape[1]
    h_pad = pl.cdiv(h, 128) * 128            # lane-dense output stores

    # Host-side (traced once) operand packing.
    adj_stacked = jnp.concatenate([adj_parent, adj_child], axis=0)        # (2n, n)
    bias_block = jnp.zeros((d, h), jnp.float32).at[0].set(bias)           # (d, h)
    w_stacked = jnp.concatenate(
        [w_self, w_parent, w_child, bias_block], axis=0)                  # (4d, h)
    if h_pad != h:
        w_stacked = jnp.pad(w_stacked, ((0, 0), (0, h_pad - h)))

    cost = pl.CostEstimate(
        flops=b * (2 * (2 * n) * n * d + 2 * n * (4 * d) * h_pad),
        transcendentals=0,
        bytes_accessed=4 * (2 * n * n + 4 * d * h_pad + b * n * d + b * n * h_pad),
    )

    out = pl.pallas_call(
        gcn_kernel,
        out_shape=jax.ShapeDtypeStruct((b, n, h_pad), jnp.float32),
        grid_spec=pltpu.PrefetchScalarGridSpec(
            num_scalar_prefetch=0,
            grid=(b,),
            in_specs=[
                pl.BlockSpec((2 * n, n), lambda i: (0, 0)),       # stacked adjacency (shared)
                pl.BlockSpec((None, n, d), lambda i: (i, 0, 0)),  # label matrix i
                pl.BlockSpec((4 * d, h_pad), lambda i: (0, 0)),   # stacked weights+bias (shared)
            ],
            out_specs=pl.BlockSpec((None, n, h_pad), lambda i: (i, 0, 0)),
        ),
        compiler_params=pltpu.CompilerParams(
            dimension_semantics=("parallel",),
        ),
        cost_estimate=cost,
    )(adj_stacked, x, w_stacked)

    out = out[..., :h]
    return out[0] if single else out


def _kaiming_normal(key, shape):
    # torch.nn.init.kaiming_normal_ default: fan_in mode, gain=sqrt(2)
    fan_in = shape[1]
    std = (2.0 / fan_in) ** 0.5
    return std * jax.random.normal(key, shape, dtype=jnp.float32)


if __name__ == "__main__":
    key = jax.random.PRNGKey(0)
    k_adj_p, k_adj_c, k_x, k_ws, k_wp, k_wc, k_b, k_xb = jax.random.split(key, 8)

    num_labels = 16   # nodes in the label graph
    input_dim = 32    # label embedding dim
    hid_q = 256       # module default output dim (multiple of 128 -> lane dense)

    # Deterministic synthetic dense 0/1 adjacency matrices.
    adj_parent = (jax.random.uniform(k_adj_p, (num_labels, num_labels)) > 0.7).astype(jnp.float32)
    adj_child = (jax.random.uniform(k_adj_c, (num_labels, num_labels)) > 0.7).astype(jnp.float32)

    label_matrix = jax.random.normal(k_x, (num_labels, input_dim), dtype=jnp.float32)

    w_self = _kaiming_normal(k_ws, (input_dim, hid_q))
    w_parent = _kaiming_normal(k_wp, (input_dim, hid_q))
    w_child = _kaiming_normal(k_wc, (input_dim, hid_q))
    # Module inits bias to 0; use a nonzero bias here to exercise the fused bias path.
    bias = 0.1 * jax.random.normal(k_b, (hid_q,), dtype=jnp.float32)

    def ref_fn(x):
        parent_emb = adj_parent @ x
        child_emb = adj_child @ x
        return jnp.maximum(
            x @ w_self + parent_emb @ w_parent + child_emb @ w_child + bias, 0.0)

    # Single-graph path (matches the PyTorch module forward exactly).
    out = gcn_forward(adj_parent, adj_child, label_matrix,
                      w_self, w_parent, w_child, bias)
    out = jax.block_until_ready(out)
    ref = ref_fn(label_matrix)
    assert out.shape == (num_labels, hid_q)
    assert jnp.allclose(out, ref, atol=1e-3, rtol=1e-3)

    # Batched path: several independent label matrices over a parallel grid
    # (amortizes per-call overhead; shards across both TCs on v7x).
    batch = 4
    xb = jax.random.normal(k_xb, (batch, num_labels, input_dim), dtype=jnp.float32)
    out_b = jax.block_until_ready(
        gcn_forward(adj_parent, adj_child, xb, w_self, w_parent, w_child, bias))
    ref_b = jax.vmap(ref_fn)(xb)
    assert out_b.shape == (batch, num_labels, hid_q)
    assert jnp.allclose(out_b, ref_b, atol=1e-3, rtol=1e-3)

    print("KERNEL_OK")
</pallas_src>

<mosaic_0001>
module attributes {stable_mosaic.version = 11 : i64} {
  func.func @gcn_kernel(%arg0: i32, %arg1: memref<32x16xf32, #tpu.memory_space<vmem>>, %arg2: memref<1x16x32xf32, #tpu.memory_space<vmem>>, %arg3: memref<128x256xf32, #tpu.memory_space<vmem>>, %arg4: memref<1x16x256xf32, #tpu.memory_space<vmem>>) attributes {dimension_semantics = [#tpu.dimension_semantics<parallel>], iteration_bounds = array<i64: 1>, scalar_prefetch = 0 : i64, scratch_operands = 0 : i64, tpu.core_type = #tpu.core_type<tc>, window_params = [{pipeline_mode = #tpu.pipeline_mode<synchronous>, transform_indices = @transform_0, window_bounds = array<i64: 32, 16>}, {transform_indices = @transform_1, window_bounds = array<i64: 1, 16, 32>}, {pipeline_mode = #tpu.pipeline_mode<synchronous>, transform_indices = @transform_2, window_bounds = array<i64: 128, 256>}, {transform_indices = @transform_3, window_bounds = array<i64: 1, 16, 256>}]} {
    %c0 = arith.constant 0 : index
    %c0_0 = arith.constant 0 : index
    %c0_1 = arith.constant 0 : index
    %0 = vector.load %arg2[%c0, %c0_0, %c0_1] : memref<1x16x32xf32, #tpu.memory_space<vmem>>, vector<1x16x32xf32>
    %1 = vector.shape_cast %0 : vector<1x16x32xf32> to vector<16x32xf32>
    %c0_2 = arith.constant 0 : index
    %c0_3 = arith.constant 0 : index
    %2 = vector.load %arg1[%c0_2, %c0_3] : memref<32x16xf32, #tpu.memory_space<vmem>>, vector<32x16xf32>
    %cst = arith.constant dense<0.000000e+00> : vector<32x32xf32>
    %3 = tpu.matmul %2, %1, %cst {dimension_numbers = #tpu.dot_dimension_numbers<[1], [0], [0], [1], [0, 0, 1, 1], [], []>} : vector<32x16xf32>, vector<16x32xf32>, vector<32x32xf32> -> vector<32x32xf32>
    %4 = vector.extract_strided_slice %3 {offsets = [0, 0], sizes = [16, 32], strides = [1, 1]} : vector<32x32xf32> to vector<16x32xf32>
    %5 = vector.extract_strided_slice %3 {offsets = [16, 0], sizes = [16, 32], strides = [1, 1]} : vector<32x32xf32> to vector<16x32xf32>
    %cst_4 = arith.constant 1.000000e+00 : f32
    %6 = vector.broadcast %cst_4 : f32 to vector<16x32xf32>
    %7 = tpu.concatenate %1, %4, %5, %6 in 1 : vector<16x32xf32>, vector<16x32xf32>, vector<16x32xf32>, vector<16x32xf32> -> vector<16x128xf32>
    %c0_5 = arith.constant 0 : index
    %c0_6 = arith.constant 0 : index
    %8 = vector.load %arg3[%c0_5, %c0_6] : memref<128x256xf32, #tpu.memory_space<vmem>>, vector<128x256xf32>
    %cst_7 = arith.constant dense<0.000000e+00> : vector<16x256xf32>
    %9 = tpu.matmul %7, %8, %cst_7 {dimension_numbers = #tpu.dot_dimension_numbers<[1], [0], [0], [1], [0, 0, 1, 1], [], []>} : vector<16x128xf32>, vector<128x256xf32>, vector<16x256xf32> -> vector<16x256xf32>
    %cst_8 = arith.constant 0.000000e+00 : f32
    %10 = vector.broadcast %cst_8 : f32 to vector<16x256xf32>
    %11 = arith.maximumf %9, %10 : vector<16x256xf32>
    %c0_9 = arith.constant 0 : index
    %c0_10 = arith.constant 0 : index
    %c0_11 = arith.constant 0 : index
    %12 = vector.load %arg4[%c0_9, %c0_10, %c0_11] : memref<1x16x256xf32, #tpu.memory_space<vmem>>, vector<1x16x256xf32>
    %13 = vector.shape_cast %12 : vector<1x16x256xf32> to vector<16x256xf32>
    %14 = vector.shape_cast %11 : vector<16x256xf32> to vector<1x16x256xf32>
    tpu.vector_store %arg4[%c0_9, %c0_10, %c0_11], %14 {strides = array<i32>} : memref<1x16x256xf32, #tpu.memory_space<vmem>>, vector<1x16x256xf32>,
    return
  }
  func.func @transform_0(%arg0: i32) -> (i32, i32) {
    %c0_i32 = arith.constant 0 : i32
    %c0_i32_0 = arith.constant 0 : i32
    %c0_i32_1 = arith.constant 0 : i32
    return %c0_i32, %c0_i32_0 : i32, i32
  }
  func.func @transform_1(%arg0: i32) -> (i32, i32, i32) {
    %c0_i32 = arith.constant 0 : i32
    %c0_i32_0 = arith.constant 0 : i32
    %c0_i32_1 = arith.constant 0 : i32
    return %arg0, %c0_i32, %c0_i32_0 : i32, i32, i32
  }
  func.func @transform_2(%arg0: i32) -> (i32, i32) {
    %c0_i32 = arith.constant 0 : i32
    %c0_i32_0 = arith.constant 0 : i32
    %c0_i32_1 = arith.constant 0 : i32
    return %c0_i32, %c0_i32_0 : i32, i32
  }
  func.func @transform_3(%arg0: i32) -> (i32, i32, i32) {
    %c0_i32 = arith.constant 0 : i32
    %c0_i32_0 = arith.constant 0 : i32
    %c0_i32_1 = arith.constant 0 : i32
    return %arg0, %c0_i32, %c0_i32_0 : i32, i32, i32
  }
}

</mosaic_0001>

<llo_original>
// kernel: tpu_custom_call.1
$region0: #{tpu_custom_call.1}
  #allocation0 [shape = 'u32[]', space=smem, size = 0x4, offset = 0x4, fixed_abs, tag = 'smem constant byte address 0x4 - core index']
  #allocation1 [shape = 'u32[72,128]{1,0:T(1,128)}', space=vmem, size = 0x9000, scoped, tag = 'internal scratch']
  %s0 = inlined_call_operand.vmem [shape: f32[32,16], index: 0, kind: input, shape index: {}]
  %s1 = inlined_call_operand.vmem [shape: f32[1,16,32], index: 1, kind: input, shape index: {}]
  %s2 = inlined_call_operand.hbm [shape: f32[128,256], index: 2, kind: input, shape index: {}]
  %s3 = inlined_call_operand.hbm [shape: f32[1,16,256], index: 3, kind: output, shape index: {}]
  %s4 = sld [smem:[#allocation0]]
  $region26: #{tpu_custom_call.1} parent=0
    _
  %s6 = ssub.s32 1, %s4
  %s7 = scalar_select 0, %s6, %s4
  $region1: #{tpu_custom_call.1} parent=0
    #allocation2 [shape = 'u8[131072]{0}', space=vmem, size = 0x20000, scoped, tag = 'input window, operand 2, single buffered']
    #allocation3 [shape = 's32[1]{0}', space=sflag, size = 0x4, scoped, tag = 'scoped memory for tpu_custom_call.1']
    #allocation4 [shape = 's32[1]{0}', space=sflag, size = 0x4, scoped, tag = 'scoped memory for tpu_custom_call.1']
    #allocation5 [shape = 'u8[16384]{0}', space=vmem, size = 0x4000, scoped, tag = 'output window, operand 0, single buffered']
    %8 = vsyncpa [#allocation3], 0
    %9 = vsyncpa [#allocation4], 0
    // Predicated region
    $region2: #{tpu_custom_call.1} parent=1 // pred_check
      _
    $region3: #{tpu_custom_call.1} parent=1 // pred_check_branch
      %11 = sbr.rel (0) target = $region5
    $region4: #{tpu_custom_call.1} parent=1 // pred_region
      _
    $region5: #{tpu_custom_call.1} parent=1 // pred_fallthru
      _
    // Predicated region
    $region6: #{tpu_custom_call.1} parent=1 // pred_check
      _
    $region7: #{tpu_custom_call.1} parent=1 // pred_check_branch
      %13 = sbr.rel (0) target = $region9
    $region8: #{tpu_custom_call.1} parent=1 // pred_region
      _
    $region9: #{tpu_custom_call.1} parent=1 // pred_fallthru
      _
    // Predicated region
    $region10: #{tpu_custom_call.1} parent=1 // pred_check
      _
    $region11: #{tpu_custom_call.1} parent=1 // pred_check_branch
      %15 = sbr.rel (0) target = $region13
    $region12: #{tpu_custom_call.1} parent=1 // pred_region
      %17 = vsyncadd [#allocation3], 0
      %s18 = sshll.u32 %s2, 4
      %s19 = int_to_ptr.hbm [resolvable:$true] %s18
      %s20 = sshll.u32 [#allocation2], 4
      %s21 = int_to_ptr.vmem [resolvable:$true] %s20
      %26 = dma.hbm_to_vmem [thread:$0]  %s19, 4096, %s21, [#allocation3], 256, 256, 16
    $region13: #{tpu_custom_call.1} parent=1 // pred_fallthru
      _
    // Predicated region
    $region14: #{tpu_custom_call.1} parent=1 // pred_check
      _
    $region15: #{tpu_custom_call.1} parent=1 // pred_check_branch
      %28 = sbr.rel (0) target = $region17
    $region16: #{tpu_custom_call.1} parent=1 // pred_region
      %30 = dma.done [#allocation3], 4096
    $region17: #{tpu_custom_call.1} parent=1 // pred_fallthru
      _
    %v31 = vld [vmem:[%s1] sm:$0xff]
    %v32 = vld [vmem:[%s1 + $0x8] sm:$0xff]
    %v33 = vld [vmem:[%s0] sm:$0xff]
    %v34 = vld [vmem:[%s0 + $0x8] sm:$0xff]
    %v35 = vld [vmem:[%s0 + $0x10] sm:$0xff]
    %v36 = vld [vmem:[%s0 + $0x18] sm:$0xff]
    %vm37 = vcmask 130048
    %v39 = vsel %vm37, %v33, 0
    %v42 = vsel %vm37, %v34, 0
    %v45 = vsel %vm37, %v35, 0
    %v48 = vsel %vm37, %v36, 0
    %50 = vmatpush.msra.mxu0 0.0
    %51 = vmatpush.msra.mxu0 0.0
    %52 = vmatpush.msra.mxu0 0.0
    %53 = vmatpush.msra.mxu0 0.0
    %54 = vmatpush.msra.mxu0 0.0
    %55 = vmatpush.msra.mxu0 0.0
    %56 = vmatpush.msra.mxu0 0.0
    %57 = vmatpush.msra.mxu0 0.0
    %58 = vmatpush.msra.mxu0 0.0
    %59 = vmatpush.msra.mxu0 0.0
    %60 = vmatpush.msra.mxu0 0.0
    %61 = vmatpush.msra.mxu0 0.0
    %62 = vmatpush.msra.mxu0 0.0
    %63 = vmatpush.msra.mxu0 0.0
    %64 = vmatpush.msra.mxu0 %v32
    %65 = vmatpush.msra.mxu0 %v31
    %66 = vmatmul.f32.gmra.mxu0 %v39
    %v67 = vpop.f32.mrf.mxu0
    %v68 = vadd.f32 0.0, %v67
    %69 = vmatmul.f32.gmra.mxu0 %v42
    %v70 = vpop.f32.mrf.mxu0
    %v71 = vadd.f32 0.0, %v70
    %72 = vmatmul.f32.gmra.mxu0 %v45
    %v73 = vpop.f32.mrf.mxu0
    %v74 = vadd.f32 0.0, %v73
    %75 = vmatmul.f32.gmra.mxu0 %v48
    %v76 = vpop.f32.mrf.mxu0
    %v77 = vadd.f32 0.0, %v76
    %78 = vdwg.mxu0
    %81 = vrot.lane.b32.xlu0 %v68, 32
    %v82 = vpop.permute.xlu0 %81
    %83 = vrot.lane.b32.xlu0 %v71, 32
    %v84 = vpop.permute.xlu0 %83
    %89 = vrot.lane.b32.xlu0 %v74, 64
    %v90 = vpop.permute.xlu0 %89
    %91 = vrot.lane.b32.xlu0 %v77, 64
    %v92 = vpop.permute.xlu0 %91
    %vm95 = vcmask 261120
    %v96 = vsel %vm95, %v31, %v82
    %v97 = vsel %vm95, %v32, %v84
    %vm98 = vcmask 523264
    %v99 = vsel %vm98, %v96, %v90
    %v100 = vsel %vm98, %v97, %v92
    %vm101 = vcmask 785408
    %v102 = vsel %vm101, %v99, 1.0
    %v103 = vsel %vm101, %v100, 1.0
    %v104 = vld [vmem:[#allocation2] sm:$0xff]
    %v105 = vld [vmem:[#allocation2 + $0x8] sm:$0xff]
    %v106 = vld [vmem:[#allocation2 + $0x10] sm:$0xff]
    %v107 = vld [vmem:[#allocation2 + $0x18] sm:$0xff]
    %v108 = vld [vmem:[#allocation2 + $0x20] sm:$0xff]
    %v109 = vld [vmem:[#allocation2 + $0x28] sm:$0xff]
    %v110 = vld [vmem:[#allocation2 + $0x30] sm:$0xff]
    %v111 = vld [vmem:[#allocation2 + $0x38] sm:$0xff]
    %v112 = vld [vmem:[#allocation2 + $0x40] sm:$0xff]
    %v113 = vld [vmem:[#allocation2 + $0x48] sm:$0xff]
    %v114 = vld [vmem:[#allocation2 + $0x50] sm:$0xff]
    %v115 = vld [vmem:[#allocation2 + $0x58] sm:$0xff]
    %v116 = vld [vmem:[#allocation2 + $0x60] sm:$0xff]
    %v117 = vld [vmem:[#allocation2 + $0x68] sm:$0xff]
    %v118 = vld [vmem:[#allocation2 + $0x70] sm:$0xff]
    %v119 = vld [vmem:[#allocation2 + $0x78] sm:$0xff]
    %v120 = vld [vmem:[#allocation2 + $0x80] sm:$0xff]
    %v121 = vld [vmem:[#allocation2 + $0x88] sm:$0xff]
    %v122 = vld [vmem:[#allocation2 + $0x90] sm:$0xff]
    %v123 = vld [vmem:[#allocation2 + $0x98] sm:$0xff]
    %v124 = vld [vmem:[#allocation2 + $0xa0] sm:$0xff]
    %v125 = vld [vmem:[#allocation2 + $0xa8] sm:$0xff]
    %v126 = vld [vmem:[#allocation2 + $0xb0] sm:$0xff]
    %v127 = vld [vmem:[#allocation2 + $0xb8] sm:$0xff]
    %v128 = vld [vmem:[#allocation2 + $0xc0] sm:$0xff]
    %v129 = vld [vmem:[#allocation2 + $0xc8] sm:$0xff]
    %v130 = vld [vmem:[#allocation2 + $0xd0] sm:$0xff]
    %v131 = vld [vmem:[#allocation2 + $0xd8] sm:$0xff]
    %v132 = vld [vmem:[#allocation2 + $0xe0] sm:$0xff]
    %v133 = vld [vmem:[#allocation2 + $0xe8] sm:$0xff]
    %v134 = vld [vmem:[#allocation2 + $0xf0] sm:$0xff]
    %v135 = vld [vmem:[#allocation2 + $0xf8] sm:$0xff]
    %136 = vmatpush.msra.mxu0 %v134
    %137 = vmatpush.msra.mxu0 %v132
    %138 = vmatpush.msra.mxu0 %v130
    %139 = vmatpush.msra.mxu0 %v128
    %140 = vmatpush.msra.mxu0 %v126
    %141 = vmatpush.msra.mxu0 %v124
    %142 = vmatpush.msra.mxu0 %v122
    %143 = vmatpush.msra.mxu0 %v120
    %144 = vmatpush.msra.mxu0 %v118
    %145 = vmatpush.msra.mxu0 %v116
    %146 = vmatpush.msra.mxu0 %v114
    %147 = vmatpush.msra.mxu0 %v112
    %148 = vmatpush.msra.mxu0 %v110
    %149 = vmatpush.msra.mxu0 %v108
    %150 = vmatpush.msra.mxu0 %v106
    %151 = vmatpush.msra.mxu0 %v104
    %152 = vmatmul.f32.gmra.mxu0 %v102
    %v153 = vpop.f32.mrf.mxu0
    %v154 = vadd.f32 0.0, %v153
    %155 = vmatmul.f32.gmra.mxu0 %v103
    %v156 = vpop.f32.mrf.mxu0
    %v157 = vadd.f32 0.0, %v156
    %158 = vdwg.mxu0
    %159 = vmatpush.msra.mxu0 %v135
    %160 = vmatpush.msra.mxu0 %v133
    %161 = vmatpush.msra.mxu0 %v131
    %162 = vmatpush.msra.mxu0 %v129
    %163 = vmatpush.msra.mxu0 %v127
    %164 = vmatpush.msra.mxu0 %v125
    %165 = vmatpush.msra.mxu0 %v123
    %166 = vmatpush.msra.mxu0 %v121
    %167 = vmatpush.msra.mxu0 %v119
    %168 = vmatpush.msra.mxu0 %v117
    %169 = vmatpush.msra.mxu0 %v115
    %170 = vmatpush.msra.mxu0 %v113
    %171 = vmatpush.msra.mxu0 %v111
    %172 = vmatpush.msra.mxu0 %v109
    %173 = vmatpush.msra.mxu0 %v107
    %174 = vmatpush.msra.mxu0 %v105
    %175 = vmatmul.f32.gmra.mxu0 %v102
    %v176 = vpop.f32.mrf.mxu0
    %v177 = vadd.f32 0.0, %v176
    %178 = vmatmul.f32.gmra.mxu0 %v103
    %v179 = vpop.f32.mrf.mxu0
    %v180 = vadd.f32 0.0, %v179
    %181 = vdwg.mxu0
    %v182 = vmax.f32 %v154, 0.0
    %v183 = vmax.f32 %v177, 0.0
    %v184 = vmax.f32 %v157, 0.0
    %v185 = vmax.f32 %v180, 0.0
    %186 = vst [vmem:[#allocation5] sm:$0xff] %v182
    %187 = vst [vmem:[#allocation5 + $0x8] sm:$0xff] %v183
    %188 = vst [vmem:[#allocation5 + $0x10] sm:$0xff] %v184
    %189 = vst [vmem:[#allocation5 + $0x18] sm:$0xff] %v185
    // Predicated region
    $region18: #{tpu_custom_call.1} parent=1 // pred_check
      _
    $region19: #{tpu_custom_call.1} parent=1 // pred_check_branch
      %191 = sbr.rel (0) target = $region21
    $region20: #{tpu_custom_call.1} parent=1 // pred_region
      %193 = vsyncadd [#allocation4], 0
      %s194 = sshll.u32 [#allocation5], 4
      %s195 = int_to_ptr.vmem [resolvable:$true] %s194
      %s196 = sshll.u32 %s3, 4
      %s197 = int_to_ptr.hbm [resolvable:$true] %s196
      %202 = dma.vmem_to_hbm [thread:$0]  %s195, 512, %s197, [#allocation4], 256, 256, 16
    $region21: #{tpu_custom_call.1} parent=1 // pred_fallthru
      _
    // Predicated region
    $region22: #{tpu_custom_call.1} parent=1 // pred_check
      _
    $region23: #{tpu_custom_call.1} parent=1 // pred_check_branch
      %204 = sbr.rel (0) target = $region25
    $region24: #{tpu_custom_call.1} parent=1 // pred_region
      %206 = dma.done [#allocation4], 512
    $region25: #{tpu_custom_call.1} parent=1 // pred_fallthru
      _
    %207 = vsyncpa [#allocation3], 1
    %208 = vsyncpa [#allocation4], 1

</llo_original>
